<compile_context>
chip_gen: v5e
topology: v5e:2x2
jax: 0.10.0
libtpu: 0.0.40
codegen_flags: <defaults>
</compile_context>

<pallas_src>
import jax
import jax.numpy as jnp
from jax.experimental import pallas as pl
from jax.experimental.pallas import tpu as pltpu


def adjust_layer_kernel(scale_ref, out_ref):
    """AdjustLayer.forward(): return self.scale (pure parameter passthrough).

    scale_ref : (1, 1) float32  -- the learnable scale parameter
    out_ref   : (1, 1) float32  -- the returned value
    """
    out_ref[...] = scale_ref[...]


@jax.jit
def adjust_layer_forward(scale):
    """Wrapper: (1,)-shaped parameter in, (1,)-shaped value out (PyTorch shape)."""
    # TPU Refs want >= 2-D; (1, 1) equals the full array dims so the
    # (8, 128) block constraint does not apply.
    scale_2d = scale.reshape(1, 1)

    vmem = pl.BlockSpec(memory_space=pltpu.MemorySpace.VMEM)

    out_2d = pl.pallas_call(
        adjust_layer_kernel,
        out_shape=jax.ShapeDtypeStruct((1, 1), scale.dtype),
        in_specs=[vmem],
        out_specs=vmem,
    )(scale_2d)

    return out_2d.reshape(1)


if __name__ == "__main__":
    key = jax.random.PRNGKey(0)

    # Case 1: module with default init_scale=1  ->  scale = [1.0]
    scale_default = jnp.full((1,), 1.0, dtype=jnp.float32)
    out_default = jax.block_until_ready(adjust_layer_forward(scale_default))
    assert out_default.shape == (1,)
    assert out_default.dtype == jnp.float32
    assert jnp.allclose(out_default, scale_default)

    # Case 2: a deterministically-random parameter value (e.g. after training),
    # to check the kernel returns exactly whatever the parameter holds.
    scale_rand = jax.random.normal(key, (1,), dtype=jnp.float32)
    out_rand = jax.block_until_ready(adjust_layer_forward(scale_rand))
    assert out_rand.shape == (1,)
    assert jnp.array_equal(out_rand, scale_rand)

    print("KERNEL_OK")
</pallas_src>

<mosaic_0001>
module attributes {stable_mosaic.version = 11 : i64} {
  func.func @adjust_layer_kernel(%arg0: memref<1x1xf32, #tpu.memory_space<vmem>>, %arg1: memref<1x1xf32, #tpu.memory_space<vmem>>) attributes {dimension_semantics = [], scalar_prefetch = 0 : i64, scratch_operands = 0 : i64, tpu.core_type = #tpu.core_type<tc>} {
    %c0 = arith.constant 0 : index
    %c0_0 = arith.constant 0 : index
    %0 = vector.load %arg0[%c0, %c0_0] : memref<1x1xf32, #tpu.memory_space<vmem>>, vector<1x1xf32>
    %c0_1 = arith.constant 0 : index
    %c0_2 = arith.constant 0 : index
    %1 = vector.load %arg1[%c0_1, %c0_2] : memref<1x1xf32, #tpu.memory_space<vmem>>, vector<1x1xf32>
    tpu.vector_store %arg1[%c0_1, %c0_2], %0 {strides = array<i32>} : memref<1x1xf32, #tpu.memory_space<vmem>>, vector<1x1xf32>,
    return
  }
}

</mosaic_0001>

<llo_original>
// kernel: adjust_layer_forward.1
$region0: #{adjust_layer_forward.1}
  #allocation0 [shape = 'u32[]', space=smem, size = 0x4, offset = 0x4, fixed_abs, tag = 'smem constant byte address 0x4 - core index']
  #allocation1 [shape = 'u32[72,128]{1,0:T(1,128)}', space=vmem, size = 0x9000, scoped, tag = 'internal scratch']
  #allocation2 [shape = 'f32[1,1]{1,0:T(1,128)S(1)}', space=vmem, size = 0x200, scoped, tag = 'scoped memory for adjust_layer_forward.1']
  %s0 = inlined_call_operand.<no memory space> [shape: f32[1,1], index: 0, kind: input, shape index: {}]
  %s1 = inlined_call_operand.hbm [shape: f32[1,1], index: 1, kind: output, shape index: {}]
  %s2 = sld [smem:[#allocation0]]
  $region14: #{adjust_layer_forward.1} parent=0
    _
  %s4 = ssub.s32 1, %s2
  %s5 = scalar_select 0, %s4, %s2
  %v6 = vstv %s0
  %7 = vst [vmem:[#allocation2] sm:$0x1] %v6
  $region1: #{adjust_layer_forward.1} parent=0
    #allocation3 [shape = 'u8[512]{0}', space=vmem, size = 0x400, scoped, tag = 'output window, operand 0, single buffered']
    #allocation4 [shape = 's32[1]{0}', space=sflag, size = 0x4, scoped, tag = 'scoped memory for adjust_layer_forward.1']
    %8 = vsyncpa [#allocation4], 0
    // Predicated region
    $region2: #{adjust_layer_forward.1} parent=1 // pred_check
      _
    $region3: #{adjust_layer_forward.1} parent=1 // pred_check_branch
      %10 = sbr.rel (0) target = $region5
    $region4: #{adjust_layer_forward.1} parent=1 // pred_region
      _
    $region5: #{adjust_layer_forward.1} parent=1 // pred_fallthru
      _
    %v11 = vld [vmem:[#allocation2] sm:$0x1]
    %vm12 = vcmask 0
    %13 = vst.msk [vmem:[#allocation3] sm:$0x1] %vm12, %v11
    // Predicated region
    $region6: #{adjust_layer_forward.1} parent=1 // pred_check
      _
    $region7: #{adjust_layer_forward.1} parent=1 // pred_check_branch
      %15 = sbr.rel (0) target = $region9
    $region8: #{adjust_layer_forward.1} parent=1 // pred_region
      %17 = vsyncadd [#allocation4], 0
      %s19 = sshll.u32 [#allocation3], 4
      %s20 = int_to_ptr.vmem [resolvable:$true] %s19
      %s21 = sshll.u32 %s1, 4
      %s22 = int_to_ptr.hbm [resolvable:$true] %s21
      %24 = dma.vmem_to_hbm [thread:$0]  %s20, 16, %s22, [#allocation4]
    $region9: #{adjust_layer_forward.1} parent=1 // pred_fallthru
      _
    // Predicated region
    $region10: #{adjust_layer_forward.1} parent=1 // pred_check
      _
    $region11: #{adjust_layer_forward.1} parent=1 // pred_check_branch
      %26 = sbr.rel (0) target = $region13
    $region12: #{adjust_layer_forward.1} parent=1 // pred_region
      %28 = dma.done [#allocation4], 16
    $region13: #{adjust_layer_forward.1} parent=1 // pred_fallthru
      _
    %29 = vsyncpa [#allocation4], 1

</llo_original>
